<compile_context>
chip_gen: v6e
topology: v6e:2x2x1
jax: 0.10.0
libtpu: 0.0.40
codegen_flags: <defaults>
</compile_context>

<pallas_src>
import jax
import jax.numpy as jnp
from jax import lax
from jax.experimental import pallas as pl
from jax.experimental.pallas import tpu as pltpu  # noqa: F401  (TPU backend)


# Contract axis 1 of both operands: equivalent to  a @ b.T  with no transpose.
_DOT_T = (((1,), (1,)), ((), ()))


# ----------------------------------------------------------------------------
# Fused kernel: encoder(inputs), encoder(labels), and the Learner head.
#   emb    = tanh(sum_pool(x) @ w_enc_scaled.T)        (w_enc_scaled = W_enc/S)
#   logits = (support_emb @ W_lin.T) @ label_emb.T
# ----------------------------------------------------------------------------
def learner_kernel(inp_ref, lab_ref, wenc_ref, wlin_ref,
                   logits_ref, sup_ref, labemb_ref):
    # bf16 operands for the MXU; accumulation stays f32.
    w_enc = wenc_ref[...].astype(jnp.bfloat16)      # (H, H), 1/S pre-folded
    w_lin = wlin_ref[...].astype(jnp.bfloat16)      # (H, H)

    # --- encoder: sum-pool (mean's 1/S folded into w_enc) -> linear -> tanh --
    sup_pooled = jnp.sum(inp_ref[...], axis=1)                  # (Bs, H) f32
    sup_emb = jnp.tanh(lax.dot_general(
        sup_pooled.astype(jnp.bfloat16), w_enc,
        dimension_numbers=_DOT_T,
        preferred_element_type=jnp.float32))                    # (Bs, H) f32

    lab_pooled = jnp.sum(lab_ref[...], axis=1)                  # (Bl, H) f32
    lab_emb = jnp.tanh(lax.dot_general(
        lab_pooled.astype(jnp.bfloat16), w_enc,
        dimension_numbers=_DOT_T,
        preferred_element_type=jnp.float32))                    # (Bl, H) f32

    sup_ref[...] = sup_emb
    labemb_ref[...] = lab_emb

    # --- head: logits = (support_emb @ W_lin.T) @ label_emb.T ----------------
    proj = lax.dot_general(
        sup_emb.astype(jnp.bfloat16), w_lin,
        dimension_numbers=_DOT_T,
        preferred_element_type=jnp.float32)                     # (Bs, H) f32
    logits_ref[...] = lax.dot_general(
        proj.astype(jnp.bfloat16), lab_emb.astype(jnp.bfloat16),
        dimension_numbers=_DOT_T,
        preferred_element_type=jnp.float32)                     # (Bs, Bl) f32


# ----------------------------------------------------------------------------
# Wrapper: single pallas_call, whole problem as one block (B*S*H ~ tens of KB,
# far under the 32 MiB scoped-VMEM default on every chip).  A batch grid with
# "parallel" semantics + lane-dense (>=128) logits tiling is the next lever if
# Bs ever grows to production scale.
# ----------------------------------------------------------------------------
def learner_forward(inputs, labels, w_enc_scaled, w_lin):
    Bs, S, H = inputs.shape
    Bl = labels.shape[0]

    flops = (2 * H * H * (Bs + Bl)       # two encoder matmuls
             + 2 * Bs * H * H            # linear head
             + 2 * Bs * H * Bl           # logits matmul
             + (Bs + Bl) * S * H)        # sum-pool adds
    bytes_accessed = 4 * ((Bs + Bl) * S * H + 2 * H * H
                          + (Bs + Bl) * H + Bs * Bl)
    cost = pl.CostEstimate(flops=flops,
                           transcendentals=(Bs + Bl) * H,
                           bytes_accessed=bytes_accessed)

    return pl.pallas_call(
        learner_kernel,
        out_shape=(
            jax.ShapeDtypeStruct((Bs, Bl), jnp.float32),   # logits
            jax.ShapeDtypeStruct((Bs, H), jnp.float32),    # support_emb
            jax.ShapeDtypeStruct((Bl, H), jnp.float32),    # label_emb
        ),
        in_specs=[
            pl.BlockSpec((Bs, S, H), lambda: (0, 0, 0)),
            pl.BlockSpec((Bl, S, H), lambda: (0, 0, 0)),
            pl.BlockSpec((H, H), lambda: (0, 0)),
            pl.BlockSpec((H, H), lambda: (0, 0)),
        ],
        out_specs=(
            pl.BlockSpec((Bs, Bl), lambda: (0, 0)),
            pl.BlockSpec((Bs, H), lambda: (0, 0)),
            pl.BlockSpec((Bl, H), lambda: (0, 0)),
        ),
        cost_estimate=cost,
    )(inputs, labels, w_enc_scaled, w_lin)


# Pure-JAX f32 reference (uses the UNSCALED encoder weight + mean-pool, so the
# 1/S weight fold is also checked).
def learner_forward_ref(inputs, labels, w_enc, w_lin):
    def enc(x):
        return jnp.tanh(jnp.mean(x, axis=1) @ w_enc.T)
    s, l = enc(inputs), enc(labels)
    return (s @ w_lin.T) @ l.T, s, l


if __name__ == "__main__":
    # Small shapes: hidden=128 (lane-aligned), seq=8, support batch 16 (N*K),
    # label batch 8 (N).
    H, S = 128, 8
    Bs, Bl = 16, 8

    key = jax.random.PRNGKey(0)
    k_in, k_lab, k_wenc, k_wlin = jax.random.split(key, 4)

    inputs = jax.random.normal(k_in, (Bs, S, H), dtype=jnp.float32)
    labels = jax.random.normal(k_lab, (Bl, S, H), dtype=jnp.float32)

    # Deterministic "parameters" (synthetic init, no checkpoint load).
    w_enc = jax.random.normal(k_wenc, (H, H), dtype=jnp.float32) / jnp.sqrt(H)
    w_lin = jax.random.normal(k_wlin, (H, H), dtype=jnp.float32) / jnp.sqrt(H)

    # One-time parameter-construction fold of the mean's 1/S into the encoder
    # weight (NOT a per-call wrapper pre-scale).
    w_enc_scaled = w_enc / jnp.float32(S)

    logits, support_emb, label_emb = jax.block_until_ready(
        learner_forward(inputs, labels, w_enc_scaled, w_lin))

    ref_logits, ref_sup, ref_lab = learner_forward_ref(
        inputs, labels, w_enc, w_lin)

    assert logits.shape == (Bs, Bl)
    assert support_emb.shape == (Bs, H)
    assert label_emb.shape == (Bl, H)
    # Tolerances loosened for bf16 MXU operands (f32 accumulation).
    assert jnp.allclose(support_emb, ref_sup, atol=2e-2, rtol=2e-2)
    assert jnp.allclose(label_emb, ref_lab, atol=2e-2, rtol=2e-2)
    assert jnp.allclose(logits, ref_logits, atol=5e-2, rtol=5e-2)

    print("KERNEL_OK")
</pallas_src>

<mosaic_0001>
module attributes {stable_mosaic.version = 11 : i64} {
  func.func @learner_kernel(%arg0: memref<16x8x128xf32, #tpu.memory_space<vmem>>, %arg1: memref<8x8x128xf32, #tpu.memory_space<vmem>>, %arg2: memref<128x128xf32, #tpu.memory_space<vmem>>, %arg3: memref<128x128xf32, #tpu.memory_space<vmem>>, %arg4: memref<16x8xf32, #tpu.memory_space<vmem>>, %arg5: memref<16x128xf32, #tpu.memory_space<vmem>>, %arg6: memref<8x128xf32, #tpu.memory_space<vmem>>) attributes {dimension_semantics = [], scalar_prefetch = 0 : i64, scratch_operands = 0 : i64, tpu.core_type = #tpu.core_type<tc>} {
    %c0 = arith.constant 0 : index
    %c0_0 = arith.constant 0 : index
    %0 = vector.load %arg2[%c0, %c0_0] : memref<128x128xf32, #tpu.memory_space<vmem>>, vector<128x128xf32>
    %1 = arith.truncf %0 : vector<128x128xf32> to vector<128x128xbf16>
    %c0_1 = arith.constant 0 : index
    %c0_2 = arith.constant 0 : index
    %2 = vector.load %arg3[%c0_1, %c0_2] : memref<128x128xf32, #tpu.memory_space<vmem>>, vector<128x128xf32>
    %3 = arith.truncf %2 : vector<128x128xf32> to vector<128x128xbf16>
    %c0_3 = arith.constant 0 : index
    %c0_4 = arith.constant 0 : index
    %c0_5 = arith.constant 0 : index
    %4 = vector.load %arg0[%c0_3, %c0_4, %c0_5] : memref<16x8x128xf32, #tpu.memory_space<vmem>>, vector<16x8x128xf32>
    %cst = arith.constant dense<0.000000e+00> : vector<16x128xf32>
    %5 = vector.multi_reduction <add>, %4, %cst [1] : vector<16x8x128xf32> to vector<16x128xf32>
    %6 = arith.truncf %5 : vector<16x128xf32> to vector<16x128xbf16>
    %cst_6 = arith.constant dense<0.000000e+00> : vector<16x128xf32>
    %7 = tpu.matmul %6, %1, %cst_6 {dimension_numbers = #tpu.dot_dimension_numbers<[1], [1], [0], [0], [0, 0, 1, 0], [], []>} : vector<16x128xbf16>, vector<128x128xbf16>, vector<16x128xf32> -> vector<16x128xf32>
    %8 = math.tanh %7 : vector<16x128xf32>
    %c0_7 = arith.constant 0 : index
    %c0_8 = arith.constant 0 : index
    %c0_9 = arith.constant 0 : index
    %9 = vector.load %arg1[%c0_7, %c0_8, %c0_9] : memref<8x8x128xf32, #tpu.memory_space<vmem>>, vector<8x8x128xf32>
    %cst_10 = arith.constant dense<0.000000e+00> : vector<8x128xf32>
    %10 = vector.multi_reduction <add>, %9, %cst_10 [1] : vector<8x8x128xf32> to vector<8x128xf32>
    %11 = arith.truncf %10 : vector<8x128xf32> to vector<8x128xbf16>
    %cst_11 = arith.constant dense<0.000000e+00> : vector<8x128xf32>
    %12 = tpu.matmul %11, %1, %cst_11 {dimension_numbers = #tpu.dot_dimension_numbers<[1], [1], [0], [0], [0, 0, 1, 0], [], []>} : vector<8x128xbf16>, vector<128x128xbf16>, vector<8x128xf32> -> vector<8x128xf32>
    %13 = math.tanh %12 : vector<8x128xf32>
    %c0_12 = arith.constant 0 : index
    %c0_13 = arith.constant 0 : index
    %14 = vector.load %arg5[%c0_12, %c0_13] : memref<16x128xf32, #tpu.memory_space<vmem>>, vector<16x128xf32>
    tpu.vector_store %arg5[%c0_12, %c0_13], %8 {strides = array<i32>} : memref<16x128xf32, #tpu.memory_space<vmem>>, vector<16x128xf32>,
    %c0_14 = arith.constant 0 : index
    %c0_15 = arith.constant 0 : index
    %15 = vector.load %arg6[%c0_14, %c0_15] : memref<8x128xf32, #tpu.memory_space<vmem>>, vector<8x128xf32>
    tpu.vector_store %arg6[%c0_14, %c0_15], %13 {strides = array<i32>} : memref<8x128xf32, #tpu.memory_space<vmem>>, vector<8x128xf32>,
    %16 = arith.truncf %8 : vector<16x128xf32> to vector<16x128xbf16>
    %cst_16 = arith.constant dense<0.000000e+00> : vector<16x128xf32>
    %17 = tpu.matmul %16, %3, %cst_16 {dimension_numbers = #tpu.dot_dimension_numbers<[1], [1], [0], [0], [0, 0, 1, 0], [], []>} : vector<16x128xbf16>, vector<128x128xbf16>, vector<16x128xf32> -> vector<16x128xf32>
    %18 = arith.truncf %17 : vector<16x128xf32> to vector<16x128xbf16>
    %19 = arith.truncf %13 : vector<8x128xf32> to vector<8x128xbf16>
    %cst_17 = arith.constant dense<0.000000e+00> : vector<16x8xf32>
    %20 = tpu.matmul %18, %19, %cst_17 {dimension_numbers = #tpu.dot_dimension_numbers<[1], [1], [0], [0], [0, 0, 1, 0], [], []>} : vector<16x128xbf16>, vector<8x128xbf16>, vector<16x8xf32> -> vector<16x8xf32>
    %c0_18 = arith.constant 0 : index
    %c0_19 = arith.constant 0 : index
    %21 = vector.load %arg4[%c0_18, %c0_19] : memref<16x8xf32, #tpu.memory_space<vmem>>, vector<16x8xf32>
    tpu.vector_store %arg4[%c0_18, %c0_19], %20 {strides = array<i32>} : memref<16x8xf32, #tpu.memory_space<vmem>>, vector<16x8xf32>,
    return
  }
}

</mosaic_0001>

<llo_original>
// kernel: tpu_custom_call.1
$region0: #{tpu_custom_call.1}
  #allocation0 [shape = 'u32[]', space=smem, size = 0x4, offset = 0x4, fixed_abs, tag = 'smem constant byte address 0x4 - core index']
  #allocation1 [shape = 'u32[144,128]{1,0:T(1,128)}', space=vmem, size = 0x12000, scoped, tag = 'internal scratch']
  %s0 = inlined_call_operand.hbm [shape: f32[16,8,128], index: 0, kind: input, shape index: {}]
  %s1 = inlined_call_operand.hbm [shape: f32[8,8,128], index: 1, kind: input, shape index: {}]
  %s2 = inlined_call_operand.hbm [shape: f32[128,128], index: 2, kind: input, shape index: {}]
  %s3 = inlined_call_operand.hbm [shape: f32[128,128], index: 3, kind: input, shape index: {}]
  %s4 = inlined_call_operand.vmem [shape: f32[16,8], index: 4, kind: output, shape index: {0}]
  %s5 = inlined_call_operand.hbm [shape: f32[16,128], index: 5, kind: output, shape index: {1}]
  %s6 = inlined_call_operand.hbm [shape: f32[8,128], index: 6, kind: output, shape index: {2}]
  %7 = xla_tuple %s4, %s5, %s6
  %s8 = sld [smem:[#allocation0]]
  $region58: #{tpu_custom_call.1} parent=0
    _
  %s10 = ssub.s32 1, %s8
  %s11 = scalar_select 0, %s10, %s8
  $region1: #{tpu_custom_call.1} parent=0
    #allocation2 [shape = 'u8[65536]{0}', space=vmem, size = 0x10000, scoped, tag = 'input window, operand 0, single buffered']
    #allocation3 [shape = 's32[1]{0}', space=sflag, size = 0x4, scoped, tag = 'scoped memory for tpu_custom_call.1']
    #allocation4 [shape = 's32[1]{0}', space=sflag, size = 0x4, scoped, tag = 'scoped memory for tpu_custom_call.1']
    #allocation5 [shape = 'u8[32768]{0}', space=vmem, size = 0x8000, scoped, tag = 'input window, operand 1, single buffered']
    #allocation6 [shape = 's32[1]{0}', space=sflag, size = 0x4, scoped, tag = 'scoped memory for tpu_custom_call.1']
    #allocation7 [shape = 'u8[65536]{0}', space=vmem, size = 0x10000, scoped, tag = 'input window, operand 2, single buffered']
    #allocation8 [shape = 'u8[65536]{0}', space=vmem, size = 0x10000, scoped, tag = 'input window, operand 3, single buffered']
    #allocation9 [shape = 's32[1]{0}', space=sflag, size = 0x4, scoped, tag = 'scoped memory for tpu_custom_call.1']
    #allocation10 [shape = 'u8[8192]{0}', space=vmem, size = 0x2000, scoped, tag = 'output window, operand 1, single buffered']
    #allocation11 [shape = 'u8[4096]{0}', space=vmem, size = 0x1000, scoped, tag = 'output window, operand 2, single buffered']
    #allocation12 [shape = 's32[1]{0}', space=sflag, size = 0x4, scoped, tag = 'scoped memory for tpu_custom_call.1']
    %12 = vsyncpa [#allocation3], 0
    %13 = vsyncpa [#allocation6], 0
    %14 = vsyncpa [#allocation9], 0
    %15 = vsyncpa [#allocation4], 0
    %16 = vsyncpa [#allocation12], 0
    // Predicated region
    $region2: #{tpu_custom_call.1} parent=1 // pred_check
      _
    $region3: #{tpu_custom_call.1} parent=1 // pred_check_branch
      %18 = sbr.rel (0) target = $region5
    $region4: #{tpu_custom_call.1} parent=1 // pred_region
      %s20 = ssub.s32 2048, 2048
      %21 = vsyncadd [#allocation3], %s20
      %s22 = sshll.u32 [#allocation2], 4
      %s23 = int_to_ptr.vmem [resolvable:$true] %s22
      %28 = dma.hbm_to_vmem [thread:$0]  %s0, 2048, %s23, [#allocation3], 128, 128, 8
    $region5: #{tpu_custom_call.1} parent=1 // pred_fallthru
      _
    // Predicated region
    $region6: #{tpu_custom_call.1} parent=1 // pred_check
      _
    $region7: #{tpu_custom_call.1} parent=1 // pred_check_branch
      %30 = sbr.rel (0) target = $region9
    $region8: #{tpu_custom_call.1} parent=1 // pred_region
      %s32 = ssub.s32 1024, 1024
      %33 = vsyncadd [#allocation6], %s32
      %s34 = sshll.u32 [#allocation5], 4
      %s35 = int_to_ptr.vmem [resolvable:$true] %s34
      %40 = dma.hbm_to_vmem [thread:$0]  %s1, 1024, %s35, [#allocation6], 128, 128, 8
    $region9: #{tpu_custom_call.1} parent=1 // pred_fallthru
      _
    // Predicated region
    $region10: #{tpu_custom_call.1} parent=1 // pred_check
      _
    $region11: #{tpu_custom_call.1} parent=1 // pred_check_branch
      %42 = sbr.rel (0) target = $region13
    $region12: #{tpu_custom_call.1} parent=1 // pred_region
      %s44 = ssub.s32 2048, 2048
      %45 = vsyncadd [#allocation6], %s44
      %s46 = sshll.u32 [#allocation7], 4
      %s47 = int_to_ptr.vmem [resolvable:$true] %s46
      %52 = dma.hbm_to_vmem [thread:$0]  %s2, 2048, %s47, [#allocation6], 128, 128, 8
    $region13: #{tpu_custom_call.1} parent=1 // pred_fallthru
      _
    // Predicated region
    $region14: #{tpu_custom_call.1} parent=1 // pred_check
      _
    $region15: #{tpu_custom_call.1} parent=1 // pred_check_branch
      %54 = sbr.rel (0) target = $region17
    $region16: #{tpu_custom_call.1} parent=1 // pred_region
      %s56 = ssub.s32 2048, 2048
      %57 = vsyncadd [#allocation9], %s56
      %s58 = sshll.u32 [#allocation8], 4
      %s59 = int_to_ptr.vmem [resolvable:$true] %s58
      %64 = dma.hbm_to_vmem [thread:$0]  %s3, 2048, %s59, [#allocation9], 128, 128, 8
    $region17: #{tpu_custom_call.1} parent=1 // pred_fallthru
      _
    // Predicated region
    $region18: #{tpu_custom_call.1} parent=1 // pred_check
      _
    $region19: #{tpu_custom_call.1} parent=1 // pred_check_branch
      %66 = sbr.rel (0) target = $region21
    $region20: #{tpu_custom_call.1} parent=1 // pred_region
      %67 = dma.done [#allocation3], 2048
    $region21: #{tpu_custom_call.1} parent=1 // pred_fallthru
      _
    // Predicated region
    $region22: #{tpu_custom_call.1} parent=1 // pred_check
      _
    $region23: #{tpu_custom_call.1} parent=1 // pred_check_branch
      %69 = sbr.rel (0) target = $region25
    $region24: #{tpu_custom_call.1} parent=1 // pred_region
      %70 = dma.done [#allocation6], 1024
    $region25: #{tpu_custom_call.1} parent=1 // pred_fallthru
      _
    // Predicated region
    $region26: #{tpu_custom_call.1} parent=1 // pred_check
      _
    $region27: #{tpu_custom_call.1} parent=1 // pred_check_branch
      %72 = sbr.rel (0) target = $region29
    $region28: #{tpu_custom_call.1} parent=1 // pred_region
      %73 = dma.done [#allocation6], 2048
    $region29: #{tpu_custom_call.1} parent=1 // pred_fallthru
      _
    // Predicated region
    $region30: #{tpu_custom_call.1} parent=1 // pred_check
      _
    $region31: #{tpu_custom_call.1} parent=1 // pred_check_branch
      %75 = sbr.rel (0) target = $region33
    $region32: #{tpu_custom_call.1} parent=1 // pred_region
      %76 = dma.done [#allocation9], 2048
    $region33: #{tpu_custom_call.1} parent=1 // pred_fallthru
      _
    %v78 = vld [vmem:[#allocation7] sm:$0xff]
    %v79 = vld [vmem:[#allocation7 + $0x8] sm:$0xff]
    %v80 = vld [vmem:[#allocation7 + $0x10] sm:$0xff]
    %v81 = vld [vmem:[#allocation7 + $0x18] sm:$0xff]
    %v82 = vld [vmem:[#allocation7 + $0x20] sm:$0xff]
    %v83 = vld [vmem:[#allocation7 + $0x28] sm:$0xff]
    %v84 = vld [vmem:[#allocation7 + $0x30] sm:$0xff]
    %v85 = vld [vmem:[#allocation7 + $0x38] sm:$0xff]
    %v86 = vld [vmem:[#allocation7 + $0x40] sm:$0xff]
    %v87 = vld [vmem:[#allocation7 + $0x48] sm:$0xff]
    %v88 = vld [vmem:[#allocation7 + $0x50] sm:$0xff]
    %v89 = vld [vmem:[#allocation7 + $0x58] sm:$0xff]
    %v90 = vld [vmem:[#allocation7 + $0x60] sm:$0xff]
    %v91 = vld [vmem:[#allocation7 + $0x68] sm:$0xff]
    %v92 = vld [vmem:[#allocation7 + $0x70] sm:$0xff]
    %v93 = vld [vmem:[#allocation7 + $0x78] sm:$0xff]
    %v94 = vpack.c.bf16 %v79, %v78
    %v95 = vpack.c.bf16 %v81, %v80
    %v96 = vpack.c.bf16 %v83, %v82
    %v97 = vpack.c.bf16 %v85, %v84
    %v98 = vpack.c.bf16 %v87, %v86
    %v99 = vpack.c.bf16 %v89, %v88
    %v100 = vpack.c.bf16 %v91, %v90
    %v101 = vpack.c.bf16 %v93, %v92
    %v102 = vld [vmem:[#allocation8] sm:$0xff]
    %v103 = vld [vmem:[#allocation8 + $0x8] sm:$0xff]
    %v104 = vld [vmem:[#allocation8 + $0x10] sm:$0xff]
    %v105 = vld [vmem:[#allocation8 + $0x18] sm:$0xff]
    %v106 = vld [vmem:[#allocation8 + $0x20] sm:$0xff]
    %v107 = vld [vmem:[#allocation8 + $0x28] sm:$0xff]
    %v108 = vld [vmem:[#allocation8 + $0x30] sm:$0xff]
    %v109 = vld [vmem:[#allocation8 + $0x38] sm:$0xff]
    %v110 = vld [vmem:[#allocation8 + $0x40] sm:$0xff]
    %v111 = vld [vmem:[#allocation8 + $0x48] sm:$0xff]
    %v112 = vld [vmem:[#allocation8 + $0x50] sm:$0xff]
    %v113 = vld [vmem:[#allocation8 + $0x58] sm:$0xff]
    %v114 = vld [vmem:[#allocation8 + $0x60] sm:$0xff]
    %v115 = vld [vmem:[#allocation8 + $0x68] sm:$0xff]
    %v116 = vld [vmem:[#allocation8 + $0x70] sm:$0xff]
    %v117 = vld [vmem:[#allocation8 + $0x78] sm:$0xff]
    %v118 = vpack.c.bf16 %v103, %v102
    %v119 = vpack.c.bf16 %v105, %v104
    %v120 = vpack.c.bf16 %v107, %v106
    %v121 = vpack.c.bf16 %v109, %v108
    %v122 = vpack.c.bf16 %v111, %v110
    %v123 = vpack.c.bf16 %v113, %v112
    %v124 = vpack.c.bf16 %v115, %v114
    %v125 = vpack.c.bf16 %v117, %v116
    %v126 = vld [vmem:[#allocation2] sm:$0xff]
    %v127 = vld [vmem:[#allocation2 + $0x8] sm:$0xff]
    %v128 = vld [vmem:[#allocation2 + $0x10] sm:$0xff]
    %v129 = vld [vmem:[#allocation2 + $0x18] sm:$0xff]
    %v130 = vld [vmem:[#allocation2 + $0x20] sm:$0xff]
    %v131 = vld [vmem:[#allocation2 + $0x28] sm:$0xff]
    %v132 = vld [vmem:[#allocation2 + $0x30] sm:$0xff]
    %v133 = vld [vmem:[#allocation2 + $0x38] sm:$0xff]
    %v134 = vld [vmem:[#allocation2 + $0x40] sm:$0xff]
    %v135 = vld [vmem:[#allocation2 + $0x48] sm:$0xff]
    %v136 = vld [vmem:[#allocation2 + $0x50] sm:$0xff]
    %v137 = vld [vmem:[#allocation2 + $0x58] sm:$0xff]
    %v138 = vld [vmem:[#allocation2 + $0x60] sm:$0xff]
    %v139 = vld [vmem:[#allocation2 + $0x68] sm:$0xff]
    %v140 = vld [vmem:[#allocation2 + $0x70] sm:$0xff]
    %v141 = vld [vmem:[#allocation2 + $0x78] sm:$0xff]
    %v142 = vrot.slane %v126, 4
    %v143 = vadd.f32 %v126, %v142
    %v144 = vrot.slane %v143, 2
    %v145 = vadd.f32 %v143, %v144
    %v146 = vrot.slane %v145, 1
    %v147 = vadd.f32 %v145, %v146
    %v148 = vrot.slane %v127, 4
    %v149 = vadd.f32 %v127, %v148
    %v150 = vrot.slane %v149, 2
    %v151 = vadd.f32 %v149, %v150
    %v152 = vrot.slane %v151, 1
    %v153 = vadd.f32 %v151, %v152
    %v154 = vrot.slane %v128, 4
    %v155 = vadd.f32 %v128, %v154
    %v156 = vrot.slane %v155, 2
    %v157 = vadd.f32 %v155, %v156
    %v158 = vrot.slane %v157, 1
    %v159 = vadd.f32 %v157, %v158
    %v160 = vrot.slane %v129, 4
    %v161 = vadd.f32 %v129, %v160
    %v162 = vrot.slane %v161, 2
    %v163 = vadd.f32 %v161, %v162
    %v164 = vrot.slane %v163, 1
    %v165 = vadd.f32 %v163, %v164
    %v166 = vrot.slane %v130, 4
    %v167 = vadd.f32 %v130, %v166
    %v168 = vrot.slane %v167, 2
    %v169 = vadd.f32 %v167, %v168
    %v170 = vrot.slane %v169, 1
    %v171 = vadd.f32 %v169, %v170
    %v172 = vrot.slane %v131, 4
    %v173 = vadd.f32 %v131, %v172
    %v174 = vrot.slane %v173, 2
    %v175 = vadd.f32 %v173, %v174
    %v176 = vrot.slane %v175, 1
    %v177 = vadd.f32 %v175, %v176
    %v178 = vrot.slane %v132, 4
    %v179 = vadd.f32 %v132, %v178
    %v180 = vrot.slane %v179, 2
    %v181 = vadd.f32 %v179, %v180
    %v182 = vrot.slane %v181, 1
    %v183 = vadd.f32 %v181, %v182
    %v184 = vrot.slane %v133, 4
    %v185 = vadd.f32 %v133, %v184
    %v186 = vrot.slane %v185, 2
    %v187 = vadd.f32 %v185, %v186
    %v188 = vrot.slane %v187, 1
    %v189 = vadd.f32 %v187, %v188
    %v190 = vrot.slane %v134, 4
    %v191 = vadd.f32 %v134, %v190
    %v192 = vrot.slane %v191, 2
    %v193 = vadd.f32 %v191, %v192
    %v194 = vrot.slane %v193, 1
    %v195 = vadd.f32 %v193, %v194
    %v196 = vrot.slane %v135, 4
    %v197 = vadd.f32 %v135, %v196
    %v198 = vrot.slane %v197, 2
    %v199 = vadd.f32 %v197, %v198
    %v200 = vrot.slane %v199, 1
    %v201 = vadd.f32 %v199, %v200
    %v202 = vrot.slane %v136, 4
    %v203 = vadd.f32 %v136, %v202
    %v204 = vrot.slane %v203, 2
    %v205 = vadd.f32 %v203, %v204
    %v206 = vrot.slane %v205, 1
    %v207 = vadd.f32 %v205, %v206
    %v208 = vrot.slane %v137, 4
    %v209 = vadd.f32 %v137, %v208
    %v210 = vrot.slane %v209, 2
    %v211 = vadd.f32 %v209, %v210
    %v212 = vrot.slane %v211, 1
    %v213 = vadd.f32 %v211, %v212
    %v214 = vrot.slane %v138, 4
    %v215 = vadd.f32 %v138, %v214
    %v216 = vrot.slane %v215, 2
    %v217 = vadd.f32 %v215, %v216
    %v218 = vrot.slane %v217, 1
    %v219 = vadd.f32 %v217, %v218
    %v220 = vrot.slane %v139, 4
    %v221 = vadd.f32 %v139, %v220
    %v222 = vrot.slane %v221, 2
    %v223 = vadd.f32 %v221, %v222
    %v224 = vrot.slane %v223, 1
    %v225 = vadd.f32 %v223, %v224
    %v226 = vrot.slane %v140, 4
    %v227 = vadd.f32 %v140, %v226
    %v228 = vrot.slane %v227, 2
    %v229 = vadd.f32 %v227, %v228
    %v230 = vrot.slane %v229, 1
    %v231 = vadd.f32 %v229, %v230
    %v232 = vrot.slane %v141, 4
    %v233 = vadd.f32 %v141, %v232
    %v234 = vrot.slane %v233, 2
    %v235 = vadd.f32 %v233, %v234
    %v236 = vrot.slane %v235, 1
    %v237 = vadd.f32 %v235, %v236
    %v238 = vpack.c.bf16 %v147, %v147
    %v239 = vpack.c.bf16 %v153, %v153
    %v240 = vpack.c.bf16 %v159, %v159
    %v241 = vpack.c.bf16 %v165, %v165
    %v242 = vpack.c.bf16 %v171, %v171
    %v243 = vpack.c.bf16 %v177, %v177
    %v244 = vpack.c.bf16 %v183, %v183
    %v245 = vpack.c.bf16 %v189, %v189
    %v246 = vpack.c.bf16 %v195, %v195
    %v247 = vpack.c.bf16 %v201, %v201
    %v248 = vpack.c.bf16 %v207, %v207
    %v249 = vpack.c.bf16 %v213, %v213
    %v250 = vpack.c.bf16 %v219, %v219
    %v251 = vpack.c.bf16 %v225, %v225
    %v252 = vpack.c.bf16 %v231, %v231
    %v253 = vpack.c.bf16 %v237, %v237
    %v270 = vunpack.c.l.b16 %v238
    %v271 = vunpack.c.l.b16 %v239
    %v272 = vunpack.c.l.b16 %v240
    %v273 = vunpack.c.l.b16 %v241
    %v274 = vunpack.c.l.b16 %v242
    %v275 = vunpack.c.l.b16 %v243
    %v276 = vunpack.c.l.b16 %v244
    %v277 = vunpack.c.l.b16 %v245
    %v278 = vunpack.c.l.b16 %v246
    %v279 = vunpack.c.l.b16 %v247
    %v280 = vunpack.c.l.b16 %v248
    %v281 = vunpack.c.l.b16 %v249
    %v282 = vunpack.c.l.b16 %v250
    %v283 = vunpack.c.l.b16 %v251
    %v284 = vunpack.c.l.b16 %v252
    %v285 = vunpack.c.l.b16 %v253
    %vm286 = vcmask 1041409
    %v287 = vsel %vm286, %v271, %v270
    %vm288 = vcmask 1042434
    %v289 = vsel %vm288, %v272, %v287
    %vm290 = vcmask 1043459
    %v291 = vsel %vm290, %v273, %v289
    %vm292 = vcmask 1044484
    %v293 = vsel %vm292, %v274, %v291
    %vm294 = vcmask 1045509
    %v295 = vsel %vm294, %v275, %v293
    %vm296 = vcmask 1046534
    %v297 = vsel %vm296, %v276, %v295
    %vm298 = vcmask 1047559
    %v299 = vsel %vm298, %v277, %v297
    %v300 = vsel %vm286, %v279, %v278
    %v301 = vsel %vm288, %v280, %v300
    %v302 = vsel %vm290, %v281, %v301
    %v303 = vsel %vm292, %v282, %v302
    %v304 = vsel %vm294, %v283, %v303
    %v305 = vsel %vm296, %v284, %v304
    %v306 = vsel %vm298, %v285, %v305
    %v307 = vpack.c.b16 %v306, %v299
    %309 = vmatprep.subr.bf16.mxu0 0
    %310 = vmatpush1.bf16.xpose.msra.mxu0 %v101
    %311 = vmatprep.subr.bf16.mxu0 0
    %312 = vmatpush1.bf16.xpose.msra.mxu0 %v100
    %313 = vmatprep.subr.bf16.mxu0 0
    %314 = vmatpush1.bf16.xpose.msra.mxu0 %v99
    %315 = vmatprep.subr.bf16.mxu0 0
    %316 = vmatpush1.bf16.xpose.msra.mxu0 %v98
    %317 = vmatprep.subr.bf16.mxu0 0
    %318 = vmatpush1.bf16.xpose.msra.mxu0 %v97
    %319 = vmatprep.subr.bf16.mxu0 0
    %320 = vmatpush1.bf16.xpose.msra.mxu0 %v96
    %321 = vmatprep.subr.bf16.mxu0 0
    %322 = vmatpush1.bf16.xpose.msra.mxu0 %v95
    %323 = vmatprep.subr.bf16.mxu0 0
    %324 = vmatpush1.bf16.xpose.msra.mxu0 %v94
    %325 = vmatprep.subr.bf16.mxu0 0
    %326 = vmatpush2.bf16.xpose.msra.mxu0 0
    %327 = vmatprep.subr.bf16.mxu0 0
    %328 = vmatpush2.bf16.xpose.msra.mxu0 0
    %329 = vmatprep.subr.bf16.mxu0 0
    %330 = vmatpush2.bf16.xpose.msra.mxu0 0
    %331 = vmatprep.subr.bf16.mxu0 0
    %332 = vmatpush2.bf16.xpose.msra.mxu0 0
    %333 = vmatprep.subr.bf16.mxu0 0
    %334 = vmatpush2.bf16.xpose.msra.mxu0 0
    %335 = vmatprep.subr.bf16.mxu0 0
    %336 = vmatpush2.bf16.xpose.msra.mxu0 0
    %337 = vmatprep.subr.bf16.mxu0 0
    %338 = vmatpush2.bf16.xpose.msra.mxu0 0
    %339 = vmatprep.subr.bf16.mxu0 0
    %340 = vmatpush2.bf16.xpose.msra.mxu0 0
    %341 = vmatprep.mubr.bf16.mxu0 0
    %342 = vmatmul.mubr.bf16.gmra.mxu0 %v307
    %v343 = vpop.f32.mrf.mxu0
    %v344 = vadd.f32 0.0, %v343
    %v345 = vpop.f32.mrf.mxu0
    %v346 = vpop.f32.mrf.mxu0
    %v347 = vadd.f32 0.0, %v346
    %v348 = vpop.f32.mrf.mxu0
    %349 = vdwg.mxu0
    %v350 = vtanh.pop %v344
    %v351 = vtanh.pop %v347
    %v352 = vld [vmem:[#allocation5] sm:$0xff]
    %v353 = vld [vmem:[#allocation5 + $0x8] sm:$0xff]
    %v354 = vld [vmem:[#allocation5 + $0x10] sm:$0xff]
    %v355 = vld [vmem:[#allocation5 + $0x18] sm:$0xff]
    %v356 = vld [vmem:[#allocation5 + $0x20] sm:$0xff]
    %v357 = vld [vmem:[#allocation5 + $0x28] sm:$0xff]
    %v358 = vld [vmem:[#allocation5 + $0x30] sm:$0xff]
    %v359 = vld [vmem:[#allocation5 + $0x38] sm:$0xff]
    %v360 = vrot.slane %v352, 4
    %v361 = vadd.f32 %v352, %v360
    %v362 = vrot.slane %v361, 2
    %v363 = vadd.f32 %v361, %v362
    %v364 = vrot.slane %v363, 1
    %v365 = vadd.f32 %v363, %v364
    %v366 = vrot.slane %v353, 4
    %v367 = vadd.f32 %v353, %v366
    %v368 = vrot.slane %v367, 2
    %v369 = vadd.f32 %v367, %v368
    %v370 = vrot.slane %v369, 1
    %v371 = vadd.f32 %v369, %v370
    %v372 = vrot.slane %v354, 4
    %v373 = vadd.f32 %v354, %v372
    %v374 = vrot.slane %v373, 2
    %v375 = vadd.f32 %v373, %v374
    %v376 = vrot.slane %v375, 1
    %v377 = vadd.f32 %v375, %v376
    %v378 = vrot.slane %v355, 4
    %v379 = vadd.f32 %v355, %v378
    %v380 = vrot.slane %v379, 2
    %v381 = vadd.f32 %v379, %v380
    %v382 = vrot.slane %v381, 1
    %v383 = vadd.f32 %v381, %v382
    %v384 = vrot.slane %v356, 4
    %v385 = vadd.f32 %v356, %v384
    %v386 = vrot.slane %v385, 2
    %v387 = vadd.f32 %v385, %v386
    %v388 = vrot.slane %v387, 1
    %v389 = vadd.f32 %v387, %v388
    %v390 = vrot.slane %v357, 4
    %v391 = vadd.f32 %v357, %v390
    %v392 = vrot.slane %v391, 2
    %v393 = vadd.f32 %v391, %v392
    %v394 = vrot.slane %v393, 1
    %v395 = vadd.f32 %v393, %v394
    %v396 = vrot.slane %v358, 4
    %v397 = vadd.f32 %v358, %v396
    %v398 = vrot.slane %v397, 2
    %v399 = vadd.f32 %v397, %v398
    %v400 = vrot.slane %v399, 1
    %v401 = vadd.f32 %v399, %v400
    %v402 = vrot.slane %v359, 4
    %v403 = vadd.f32 %v359, %v402
    %v404 = vrot.slane %v403, 2
    %v405 = vadd.f32 %v403, %v404
    %v406 = vrot.slane %v405, 1
    %v407 = vadd.f32 %v405, %v406
    %v408 = vpack.c.bf16 %v365, %v365
    %v409 = vpack.c.bf16 %v371, %v371
    %v410 = vpack.c.bf16 %v377, %v377
    %v411 = vpack.c.bf16 %v383, %v383
    %v412 = vpack.c.bf16 %v389, %v389
    %v413 = vpack.c.bf16 %v395, %v395
    %v414 = vpack.c.bf16 %v401, %v401
    %v415 = vpack.c.bf16 %v407, %v407
    %v424 = vunpack.c.l.b16 %v408
    %v425 = vunpack.c.l.b16 %v409
    %v426 = vunpack.c.l.b16 %v410
    %v427 = vunpack.c.l.b16 %v411
    %v428 = vunpack.c.l.b16 %v412
    %v429 = vunpack.c.l.b16 %v413
    %v430 = vunpack.c.l.b16 %v414
    %v431 = vunpack.c.l.b16 %v415
    %v432 = vsel %vm286, %v425, %v424
    %v433 = vsel %vm288, %v426, %v432
    %v434 = vsel %vm290, %v427, %v433
    %v435 = vsel %vm292, %v428, %v434
    %v436 = vsel %vm294, %v429, %v435
    %v437 = vsel %vm296, %v430, %v436
    %v438 = vsel %vm298, %v431, %v437
    %v439 = vpack.c.b16 %v438, %v438
    %441 = vmatprep.subr.bf16.mxu0 0
    %442 = vmatpush1.bf16.xpose.msra.mxu0 %v101
    %443 = vmatprep.subr.bf16.mxu0 0
    %444 = vmatpush1.bf16.xpose.msra.mxu0 %v100
    %445 = vmatprep.subr.bf16.mxu0 0
    %446 = vmatpush1.bf16.xpose.msra.mxu0 %v99
    %447 = vmatprep.subr.bf16.mxu0 0
    %448 = vmatpush1.bf16.xpose.msra.mxu0 %v98
    %449 = vmatprep.subr.bf16.mxu0 0
    %450 = vmatpush1.bf16.xpose.msra.mxu0 %v97
    %451 = vmatprep.subr.bf16.mxu0 0
    %452 = vmatpush1.bf16.xpose.msra.mxu0 %v96
    %453 = vmatprep.subr.bf16.mxu0 0
    %454 = vmatpush1.bf16.xpose.msra.mxu0 %v95
    %455 = vmatprep.subr.bf16.mxu0 0
    %456 = vmatpush1.bf16.xpose.msra.mxu0 %v94
    %457 = vmatprep.subr.bf16.mxu0 0
    %458 = vmatpush2.bf16.xpose.msra.mxu0 0
    %459 = vmatprep.subr.bf16.mxu0 0
    %460 = vmatpush2.bf16.xpose.msra.mxu0 0
    %461 = vmatprep.subr.bf16.mxu0 0
    %462 = vmatpush2.bf16.xpose.msra.mxu0 0
    %463 = vmatprep.subr.bf16.mxu0 0
    %464 = vmatpush2.bf16.xpose.msra.mxu0 0
    %465 = vmatprep.subr.bf16.mxu0 0
    %466 = vmatpush2.bf16.xpose.msra.mxu0 0
    %467 = vmatprep.subr.bf16.mxu0 0
    %468 = vmatpush2.bf16.xpose.msra.mxu0 0
    %469 = vmatprep.subr.bf16.mxu0 0
    %470 = vmatpush2.bf16.xpose.msra.mxu0 0
    %471 = vmatprep.subr.bf16.mxu0 0
    %472 = vmatpush2.bf16.xpose.msra.mxu0 0
    %473 = vmatprep.mubr.bf16.mxu0 0
    %474 = vmatmul.mubr.bf16.gmra.mxu0 %v439
    %v475 = vpop.f32.mrf.mxu0
    %v476 = vadd.f32 0.0, %v475
    %v477 = vpop.f32.mrf.mxu0
    %v478 = vpop.f32.mrf.mxu0
    %v479 = vpop.f32.mrf.mxu0
    %480 = vdwg.mxu0
    %v481 = vtanh.pop %v476
    %482 = vst [vmem:[#allocation10] sm:$0xff] %v350
    %483 = vst [vmem:[#allocation10 + $0x8] sm:$0xff] %v351
    %484 = vst [vmem:[#allocation11] sm:$0xff] %v481
    %v485 = vpack.c.bf16 %v351, %v350
    %486 = vmatprep.subr.bf16.mxu0 0
    %487 = vmatpush1.bf16.xpose.msra.mxu0 %v125
    %488 = vmatprep.subr.bf16.mxu0 0
    %489 = vmatpush1.bf16.xpose.msra.mxu0 %v124
    %490 = vmatprep.subr.bf16.mxu0 0
    %491 = vmatpush1.bf16.xpose.msra.mxu0 %v123
    %492 = vmatprep.subr.bf16.mxu0 0
    %493 = vmatpush1.bf16.xpose.msra.mxu0 %v122
    %494 = vmatprep.subr.bf16.mxu0 0
    %495 = vmatpush1.bf16.xpose.msra.mxu0 %v121
    %496 = vmatprep.subr.bf16.mxu0 0
    %497 = vmatpush1.bf16.xpose.msra.mxu0 %v120
    %498 = vmatprep.subr.bf16.mxu0 0
    %499 = vmatpush1.bf16.xpose.msra.mxu0 %v119
    %500 = vmatprep.subr.bf16.mxu0 0
    %501 = vmatpush1.bf16.xpose.msra.mxu0 %v118
    %502 = vmatprep.subr.bf16.mxu0 0
    %503 = vmatpush2.bf16.xpose.msra.mxu0 0
    %504 = vmatprep.subr.bf16.mxu0 0
    %505 = vmatpush2.bf16.xpose.msra.mxu0 0
    %506 = vmatprep.subr.bf16.mxu0 0
    %507 = vmatpush2.bf16.xpose.msra.mxu0 0
    %508 = vmatprep.subr.bf16.mxu0 0
    %509 = vmatpush2.bf16.xpose.msra.mxu0 0
    %510 = vmatprep.subr.bf16.mxu0 0
    %511 = vmatpush2.bf16.xpose.msra.mxu0 0
    %512 = vmatprep.subr.bf16.mxu0 0
    %513 = vmatpush2.bf16.xpose.msra.mxu0 0
    %514 = vmatprep.subr.bf16.mxu0 0
    %515 = vmatpush2.bf16.xpose.msra.mxu0 0
    %516 = vmatprep.subr.bf16.mxu0 0
    %517 = vmatpush2.bf16.xpose.msra.mxu0 0
    %518 = vmatprep.mubr.bf16.mxu0 0
    %519 = vmatmul.mubr.bf16.gmra.mxu0 %v485
    %v520 = vpop.f32.mrf.mxu0
    %v521 = vadd.f32 0.0, %v520
    %v522 = vpop.f32.mrf.mxu0
    %v523 = vpop.f32.mrf.mxu0
    %v524 = vadd.f32 0.0, %v523
    %v525 = vpop.f32.mrf.mxu0
    %526 = vdwg.mxu0
    %v527 = vpack.c.bf16 %v524, %v521
    %v528 = vpack.c.bf16 %v481, %v481
    %529 = vmatprep.subr.bf16.mxu0 0
    %530 = vmatpush1.bf16.xpose.msra.mxu0 0
    %531 = vmatprep.subr.bf16.mxu0 0
    %532 = vmatpush1.bf16.xpose.msra.mxu0 0
    %533 = vmatprep.subr.bf16.mxu0 0
    %534 = vmatpush1.bf16.xpose.msra.mxu0 0
    %535 = vmatprep.subr.bf16.mxu0 0
    %536 = vmatpush1.bf16.xpose.msra.mxu0 0
    %537 = vmatprep.subr.bf16.mxu0 0
    %538 = vmatpush1.bf16.xpose.msra.mxu0 0
    %539 = vmatprep.subr.bf16.mxu0 0
    %540 = vmatpush1.bf16.xpose.msra.mxu0 0
    %541 = vmatprep.subr.bf16.mxu0 0
    %542 = vmatpush1.bf16.xpose.msra.mxu0 0
    %543 = vmatprep.subr.bf16.mxu0 0
    %544 = vmatpush1.bf16.xpose.msra.mxu0 %v528
    %545 = vmatprep.subr.bf16.mxu0 0
    %546 = vmatpush2.bf16.xpose.msra.mxu0 0
    %547 = vmatprep.subr.bf16.mxu0 0
    %548 = vmatpush2.bf16.xpose.msra.mxu0 0
    %549 = vmatprep.subr.bf16.mxu0 0
    %550 = vmatpush2.bf16.xpose.msra.mxu0 0
    %551 = vmatprep.subr.bf16.mxu0 0
    %552 = vmatpush2.bf16.xpose.msra.mxu0 0
    %553 = vmatprep.subr.bf16.mxu0 0
    %554 = vmatpush2.bf16.xpose.msra.mxu0 0
    %555 = vmatprep.subr.bf16.mxu0 0
    %556 = vmatpush2.bf16.xpose.msra.mxu0 0
    %557 = vmatprep.subr.bf16.mxu0 0
    %558 = vmatpush2.bf16.xpose.msra.mxu0 0
    %559 = vmatprep.subr.bf16.mxu0 0
    %560 = vmatpush2.bf16.xpose.msra.mxu0 0
    %561 = vmatprep.mubr.bf16.mxu0 0
    %562 = vmatmul.mubr.bf16.gmra.mxu0 %v527
    %v563 = vpop.f32.mrf.mxu0
    %v564 = vadd.f32 0.0, %v563
    %v565 = vpop.f32.mrf.mxu0
    %v566 = vpop.f32.mrf.mxu0
    %v567 = vadd.f32 0.0, %v566
    %v568 = vpop.f32.mrf.mxu0
    %569 = vdwg.mxu0
    %vm570 = vcmask 64512
    %571 = vst.msk [vmem:[%s4] sm:$0xff] %vm570, %v564
    %572 = vst.msk [vmem:[%s4 + $0x8] sm:$0xff] %vm570, %v567
    // Predicated region
    $region34: #{tpu_custom_call.1} parent=1 // pred_check
      _
    $region35: #{tpu_custom_call.1} parent=1 // pred_check_branch
      %574 = sbr.rel (0) target = $region37
    $region36: #{tpu_custom_call.1} parent=1 // pred_region
      _
    $region37: #{tpu_custom_call.1} parent=1 // pred_fallthru
      _
    // Predicated region
    $region38: #{tpu_custom_call.1} parent=1 // pred_check
      _
    $region39: #{tpu_custom_call.1} parent=1 // pred_check_branch
      %576 = sbr.rel (0) target = $region41
    $region40: #{tpu_custom_call.1} parent=1 // pred_region
      %s578 = ssub.s32 256, 256
      %579 = vsyncadd [#allocation4], %s578
      %s580 = sshll.u32 [#allocation10], 4
      %s581 = int_to_ptr.vmem [resolvable:$true] %s580
      %586 = dma.vmem_to_hbm [thread:$0]  %s581, 256, %s5, [#allocation4], 128, 128, 8
    $region41: #{tpu_custom_call.1} parent=1 // pred_fallthru
      _
    // Predicated region
    $region42: #{tpu_custom_call.1} parent=1 // pred_check
      _
    $region43: #{tpu_custom_call.1} parent=1 // pred_check_branch
      %588 = sbr.rel (0) target = $region45
    $region44: #{tpu_custom_call.1} parent=1 // pred_region
      %s590 = ssub.s32 128, 128
      %591 = vsyncadd [#allocation12], %s590
      %s593 = sshll.u32 [#allocation11], 4
      %s594 = int_to_ptr.vmem [resolvable:$true] %s593
      %596 = dma.vmem_to_hbm [thread:$0]  %s594, 128, %s6, [#allocation12]
    $region45: #{tpu_custom_call.1} parent=1 // pred_fallthru
      _
    // Predicated region
    $region46: #{tpu_custom_call.1} parent=1 // pred_check
      _
    $region47: #{tpu_custom_call.1} parent=1 // pred_check_branch
      %598 = sbr.rel (0) target = $region49
    $region48: #{tpu_custom_call.1} parent=1 // pred_region
      _
    $region49: #{tpu_custom_call.1} parent=1 // pred_fallthru
      _
    // Predicated region
    $region50: #{tpu_custom_call.1} parent=1 // pred_check
      _
    $region51: #{tpu_custom_call.1} parent=1 // pred_check_branch
      %600 = sbr.rel (0) target = $region53
    $region52: #{tpu_custom_call.1} parent=1 // pred_region
      %601 = dma.done [#allocation4], 256
    $region53: #{tpu_custom_call.1} parent=1 // pred_fallthru
      _
    // Predicated region
    $region54: #{tpu_custom_call.1} parent=1 // pred_check
      _
    $region55: #{tpu_custom_call.1} parent=1 // pred_check_branch
      %603 = sbr.rel (0) target = $region57
    $region56: #{tpu_custom_call.1} parent=1 // pred_region
      %604 = dma.done [#allocation12], 128
    $region57: #{tpu_custom_call.1} parent=1 // pred_fallthru
      _
    %605 = vsyncpa [#allocation3], 1
    %606 = vsyncpa [#allocation6], 1
    %607 = vsyncpa [#allocation9], 1
    %608 = vsyncpa [#allocation4], 1
    %609 = vsyncpa [#allocation12], 1

</llo_original>
